<compile_context>
chip_gen: v5e
topology: v5e:2x2
jax: 0.10.0
libtpu: 0.0.40
codegen_flags: <defaults>
</compile_context>

<pallas_src>
import jax
import jax.numpy as jnp
from jax.experimental import pallas as pl
from jax.experimental.pallas import tpu as pltpu

# Small shapes consistent with the module's forward pass (scaled down from
# input_size=768 / hidden_size=512 in the spec).
INPUT_SIZE = 32
HIDDEN_SIZE = 32
NUM_LAYERS = 1
BATCH = 2
SEQ = 8


def _bilstm_last_relu_kernel(x_ref, wih_ref, b_ref, whh_f_ref, whh_b_ref,
                             h0_ref, c0_ref, out_ref):
    T = SEQ
    B = BATCH
    H = HIDDEN_SIZE
    G = 4 * H

    # --- Hoisted input projection (+ bias) for both directions: one MXU op
    # over all timesteps: (T*B, D) @ (D, 8H) + (1, 8H).
    gx_all = jnp.dot(x_ref[...], wih_ref[...],
                     preferred_element_type=jnp.float32) + b_ref[...]
    gx_f = gx_all[:, :G]                    # (T*B, 4H) forward gate pre-acts
    gx_b_last = gx_all[(T - 1) * B:, G:]    # (B, 4H)   backward gates at t=T-1

    whh_f = whh_f_ref[...]
    whh_b = whh_b_ref[...]

    def gate_act(gates):
        # One full-width sigmoid and one full-width tanh (EUP has slack),
        # then 32-lane selects for the individual gates.
        sig = jax.nn.sigmoid(gates)
        tnh = jnp.tanh(gates)
        i = sig[:, 0 * H:1 * H]
        f = sig[:, 1 * H:2 * H]
        g = tnh[:, 2 * H:3 * H]
        o = sig[:, 3 * H:4 * H]
        return i, f, g, o

    # --- Backward direction: out[:, -1, H:] is exactly the backward hidden
    # state after one step from the initial state on x[:, -1]. It is
    # data-independent of the forward recurrence, so issue it up front.
    gb = gx_b_last + jnp.dot(h0_ref[1], whh_b, preferred_element_type=jnp.float32)
    ib, fb, gb_g, ob = gate_act(gb)
    c_b = fb * c0_ref[1] + ib * gb_g
    h_b = ob * jnp.tanh(c_b)

    # --- Forward recurrence, fully unrolled (T is a compile-time constant).
    # Each step is a single small MXU matmul on the serial dependence chain.
    h = h0_ref[0]
    c = c0_ref[0]
    for t in range(T):
        gates = gx_f[t * B:(t + 1) * B, :] + jnp.dot(
            h, whh_f, preferred_element_type=jnp.float32)
        i, f, g, o = gate_act(gates)
        c = f * c + i * g
        h = o * jnp.tanh(c)

    # --- Single (B, 2H) store with the final ReLU fused in.
    out_ref[...] = jnp.maximum(jnp.concatenate([h, h_b], axis=-1), 0.0)


def bilstm_last_relu(x, params, h0, c0):
    """x: (B, T, D) float32, h0/c0: (2, B, H). Returns relu(lstm(x)[:, -1, :])."""
    B, T, D = x.shape
    H = HIDDEN_SIZE

    # Time-major 2-D view so the kernel can do one hoisted (T*B, D) @ (D, 8H)
    # projection and address per-timestep rows with static slices.
    x2d = jnp.transpose(x, (1, 0, 2)).reshape(T * B, D)

    # Stack forward/backward input weights along the 4H axis (one matmul
    # produces both directions' gate pre-activations); biases folded alongside.
    wih_all = jnp.concatenate([params['wih_f'], params['wih_b']], axis=1)  # (D, 8H)
    b_all = jnp.concatenate([params['b_f'], params['b_b']], axis=1)        # (1, 8H)

    vmem = pl.BlockSpec(memory_space=pltpu.MemorySpace.VMEM)
    cost = pl.CostEstimate(flops=450_000, transcendentals=6_000,
                           bytes_accessed=72_000)
    return pl.pallas_call(
        _bilstm_last_relu_kernel,
        out_shape=jax.ShapeDtypeStruct((B, 2 * H), jnp.float32),
        in_specs=[vmem] * 7,
        out_specs=vmem,
        cost_estimate=cost,
    )(x2d, wih_all, b_all, params['whh_f'], params['whh_b'], h0, c0)


def _reference(x, params, h0, c0):
    """Pure-JAX reference matching PyTorch LSTM semantics for out[:, -1, :]."""
    H = HIDDEN_SIZE

    def cell(x_t, h, c, wih, whh, b):
        g = x_t @ wih + h @ whh + b
        i = jax.nn.sigmoid(g[:, :H])
        f = jax.nn.sigmoid(g[:, H:2 * H])
        gg = jnp.tanh(g[:, 2 * H:3 * H])
        o = jax.nn.sigmoid(g[:, 3 * H:])
        c = f * c + i * gg
        h = o * jnp.tanh(c)
        return h, c

    h, c = h0[0], c0[0]
    for t in range(x.shape[1]):
        h, c = cell(x[:, t], h, c, params['wih_f'], params['whh_f'], params['b_f'])
    hb, _ = cell(x[:, -1], h0[1], c0[1], params['wih_b'], params['whh_b'], params['b_b'])
    return jnp.maximum(jnp.concatenate([h, hb], axis=-1), 0.0)


if __name__ == "__main__":
    key = jax.random.PRNGKey(0)
    ks = jax.random.split(key, 12)
    kscale = 1.0 / (HIDDEN_SIZE ** 0.5)

    def u(k, shape):
        return jax.random.uniform(k, shape, jnp.float32, -kscale, kscale)

    # Deterministic parameter init (PyTorch-style uniform(-1/sqrt(H), 1/sqrt(H))).
    # b_* folds PyTorch's b_ih + b_hh into one bias vector per direction.
    params = {
        'wih_f': u(ks[0], (INPUT_SIZE, 4 * HIDDEN_SIZE)),
        'whh_f': u(ks[1], (HIDDEN_SIZE, 4 * HIDDEN_SIZE)),
        'b_f':   u(ks[2], (1, 4 * HIDDEN_SIZE)) + u(ks[3], (1, 4 * HIDDEN_SIZE)),
        'wih_b': u(ks[4], (INPUT_SIZE, 4 * HIDDEN_SIZE)),
        'whh_b': u(ks[5], (HIDDEN_SIZE, 4 * HIDDEN_SIZE)),
        'b_b':   u(ks[6], (1, 4 * HIDDEN_SIZE)) + u(ks[7], (1, 4 * HIDDEN_SIZE)),
    }

    x = jax.random.normal(ks[8], (BATCH, SEQ, INPUT_SIZE), jnp.float32)
    # The PyTorch forward draws h0/c0 with torch.randn each call; here they are
    # deterministic normal draws (same distribution, fixed seed).
    h0 = jax.random.normal(ks[9], (NUM_LAYERS * 2, BATCH, HIDDEN_SIZE), jnp.float32)
    c0 = jax.random.normal(ks[10], (NUM_LAYERS * 2, BATCH, HIDDEN_SIZE), jnp.float32)

    out = jax.block_until_ready(bilstm_last_relu(x, params, h0, c0))
    ref = _reference(x, params, h0, c0)
    assert out.shape == (BATCH, 2 * HIDDEN_SIZE)
    assert jnp.allclose(out, ref, rtol=2e-3, atol=2e-3)
    print("KERNEL_OK")
</pallas_src>

<mosaic_0001>
module attributes {stable_mosaic.version = 11 : i64} {
  func.func @_bilstm_last_relu_kernel(%arg0: memref<16x32xf32, #tpu.memory_space<vmem>>, %arg1: memref<32x256xf32, #tpu.memory_space<vmem>>, %arg2: memref<1x256xf32, #tpu.memory_space<vmem>>, %arg3: memref<32x128xf32, #tpu.memory_space<vmem>>, %arg4: memref<32x128xf32, #tpu.memory_space<vmem>>, %arg5: memref<2x2x32xf32, #tpu.memory_space<vmem>>, %arg6: memref<2x2x32xf32, #tpu.memory_space<vmem>>, %arg7: memref<2x64xf32, #tpu.memory_space<vmem>>) attributes {dimension_semantics = [], scalar_prefetch = 0 : i64, scratch_operands = 0 : i64, tpu.core_type = #tpu.core_type<tc>} {
    %c0 = arith.constant 0 : index
    %c0_0 = arith.constant 0 : index
    %0 = vector.load %arg0[%c0, %c0_0] : memref<16x32xf32, #tpu.memory_space<vmem>>, vector<16x32xf32>
    %c0_1 = arith.constant 0 : index
    %c0_2 = arith.constant 0 : index
    %1 = vector.load %arg1[%c0_1, %c0_2] : memref<32x256xf32, #tpu.memory_space<vmem>>, vector<32x256xf32>
    %cst = arith.constant dense<0.000000e+00> : vector<16x256xf32>
    %2 = tpu.matmul %0, %1, %cst {dimension_numbers = #tpu.dot_dimension_numbers<[1], [0], [0], [1], [0, 0, 1, 1], [], []>} : vector<16x32xf32>, vector<32x256xf32>, vector<16x256xf32> -> vector<16x256xf32>
    %c0_3 = arith.constant 0 : index
    %c0_4 = arith.constant 0 : index
    %3 = vector.load %arg2[%c0_3, %c0_4] : memref<1x256xf32, #tpu.memory_space<vmem>>, vector<1x256xf32>
    %4 = vector.broadcast %3 : vector<1x256xf32> to vector<16x256xf32>
    %5 = arith.addf %2, %4 : vector<16x256xf32>
    %6 = vector.extract_strided_slice %5 {offsets = [0, 0], sizes = [16, 128], strides = [1, 1]} : vector<16x256xf32> to vector<16x128xf32>
    %7 = vector.extract_strided_slice %5 {offsets = [14, 128], sizes = [2, 128], strides = [1, 1]} : vector<16x256xf32> to vector<2x128xf32>
    %c0_5 = arith.constant 0 : index
    %c0_6 = arith.constant 0 : index
    %8 = vector.load %arg3[%c0_5, %c0_6] : memref<32x128xf32, #tpu.memory_space<vmem>>, vector<32x128xf32>
    %c0_7 = arith.constant 0 : index
    %c0_8 = arith.constant 0 : index
    %9 = vector.load %arg4[%c0_7, %c0_8] : memref<32x128xf32, #tpu.memory_space<vmem>>, vector<32x128xf32>
    %c1 = arith.constant 1 : index
    %c0_9 = arith.constant 0 : index
    %c0_10 = arith.constant 0 : index
    %10 = vector.load %arg5[%c1, %c0_9, %c0_10] : memref<2x2x32xf32, #tpu.memory_space<vmem>>, vector<1x2x32xf32>
    %11 = vector.shape_cast %10 : vector<1x2x32xf32> to vector<2x32xf32>
    %cst_11 = arith.constant dense<0.000000e+00> : vector<2x128xf32>
    %12 = tpu.matmul %11, %9, %cst_11 {dimension_numbers = #tpu.dot_dimension_numbers<[1], [0], [0], [1], [0, 0, 1, 1], [], []>} : vector<2x32xf32>, vector<32x128xf32>, vector<2x128xf32> -> vector<2x128xf32>
    %13 = arith.addf %7, %12 : vector<2x128xf32>
    %14 = arith.negf %13 : vector<2x128xf32>
    %15 = math.exp %14 : vector<2x128xf32>
    %cst_12 = arith.constant 1.000000e+00 : f32
    %16 = vector.broadcast %cst_12 : f32 to vector<2x128xf32>
    %17 = arith.addf %16, %15 : vector<2x128xf32>
    %18 = arith.divf %16, %17 : vector<2x128xf32>
    %19 = math.tanh %13 : vector<2x128xf32>
    %20 = vector.extract_strided_slice %18 {offsets = [0, 0], sizes = [2, 32], strides = [1, 1]} : vector<2x128xf32> to vector<2x32xf32>
    %21 = vector.extract_strided_slice %18 {offsets = [0, 32], sizes = [2, 32], strides = [1, 1]} : vector<2x128xf32> to vector<2x32xf32>
    %22 = vector.extract_strided_slice %19 {offsets = [0, 64], sizes = [2, 32], strides = [1, 1]} : vector<2x128xf32> to vector<2x32xf32>
    %23 = vector.extract_strided_slice %18 {offsets = [0, 96], sizes = [2, 32], strides = [1, 1]} : vector<2x128xf32> to vector<2x32xf32>
    %c1_13 = arith.constant 1 : index
    %c0_14 = arith.constant 0 : index
    %c0_15 = arith.constant 0 : index
    %24 = vector.load %arg6[%c1_13, %c0_14, %c0_15] : memref<2x2x32xf32, #tpu.memory_space<vmem>>, vector<1x2x32xf32>
    %25 = vector.shape_cast %24 : vector<1x2x32xf32> to vector<2x32xf32>
    %26 = arith.mulf %21, %25 : vector<2x32xf32>
    %27 = arith.mulf %20, %22 : vector<2x32xf32>
    %28 = arith.addf %26, %27 : vector<2x32xf32>
    %29 = math.tanh %28 : vector<2x32xf32>
    %30 = arith.mulf %23, %29 : vector<2x32xf32>
    %c0_16 = arith.constant 0 : index
    %c0_17 = arith.constant 0 : index
    %c0_18 = arith.constant 0 : index
    %31 = vector.load %arg5[%c0_16, %c0_17, %c0_18] : memref<2x2x32xf32, #tpu.memory_space<vmem>>, vector<1x2x32xf32>
    %32 = vector.shape_cast %31 : vector<1x2x32xf32> to vector<2x32xf32>
    %c0_19 = arith.constant 0 : index
    %c0_20 = arith.constant 0 : index
    %c0_21 = arith.constant 0 : index
    %33 = vector.load %arg6[%c0_19, %c0_20, %c0_21] : memref<2x2x32xf32, #tpu.memory_space<vmem>>, vector<1x2x32xf32>
    %34 = vector.shape_cast %33 : vector<1x2x32xf32> to vector<2x32xf32>
    %35 = vector.extract_strided_slice %6 {offsets = [0, 0], sizes = [2, 128], strides = [1, 1]} : vector<16x128xf32> to vector<2x128xf32>
    %cst_22 = arith.constant dense<0.000000e+00> : vector<2x128xf32>
    %36 = tpu.matmul %32, %8, %cst_22 {dimension_numbers = #tpu.dot_dimension_numbers<[1], [0], [0], [1], [0, 0, 1, 1], [], []>} : vector<2x32xf32>, vector<32x128xf32>, vector<2x128xf32> -> vector<2x128xf32>
    %37 = arith.addf %35, %36 : vector<2x128xf32>
    %38 = arith.negf %37 : vector<2x128xf32>
    %39 = math.exp %38 : vector<2x128xf32>
    %cst_23 = arith.constant 1.000000e+00 : f32
    %40 = vector.broadcast %cst_23 : f32 to vector<2x128xf32>
    %41 = arith.addf %40, %39 : vector<2x128xf32>
    %42 = arith.divf %40, %41 : vector<2x128xf32>
    %43 = math.tanh %37 : vector<2x128xf32>
    %44 = vector.extract_strided_slice %42 {offsets = [0, 0], sizes = [2, 32], strides = [1, 1]} : vector<2x128xf32> to vector<2x32xf32>
    %45 = vector.extract_strided_slice %42 {offsets = [0, 32], sizes = [2, 32], strides = [1, 1]} : vector<2x128xf32> to vector<2x32xf32>
    %46 = vector.extract_strided_slice %43 {offsets = [0, 64], sizes = [2, 32], strides = [1, 1]} : vector<2x128xf32> to vector<2x32xf32>
    %47 = vector.extract_strided_slice %42 {offsets = [0, 96], sizes = [2, 32], strides = [1, 1]} : vector<2x128xf32> to vector<2x32xf32>
    %48 = arith.mulf %45, %34 : vector<2x32xf32>
    %49 = arith.mulf %44, %46 : vector<2x32xf32>
    %50 = arith.addf %48, %49 : vector<2x32xf32>
    %51 = math.tanh %50 : vector<2x32xf32>
    %52 = arith.mulf %47, %51 : vector<2x32xf32>
    %53 = vector.extract_strided_slice %6 {offsets = [2, 0], sizes = [2, 128], strides = [1, 1]} : vector<16x128xf32> to vector<2x128xf32>
    %cst_24 = arith.constant dense<0.000000e+00> : vector<2x128xf32>
    %54 = tpu.matmul %52, %8, %cst_24 {dimension_numbers = #tpu.dot_dimension_numbers<[1], [0], [0], [1], [0, 0, 1, 1], [], []>} : vector<2x32xf32>, vector<32x128xf32>, vector<2x128xf32> -> vector<2x128xf32>
    %55 = arith.addf %53, %54 : vector<2x128xf32>
    %56 = arith.negf %55 : vector<2x128xf32>
    %57 = math.exp %56 : vector<2x128xf32>
    %cst_25 = arith.constant 1.000000e+00 : f32
    %58 = vector.broadcast %cst_25 : f32 to vector<2x128xf32>
    %59 = arith.addf %58, %57 : vector<2x128xf32>
    %60 = arith.divf %58, %59 : vector<2x128xf32>
    %61 = math.tanh %55 : vector<2x128xf32>
    %62 = vector.extract_strided_slice %60 {offsets = [0, 0], sizes = [2, 32], strides = [1, 1]} : vector<2x128xf32> to vector<2x32xf32>
    %63 = vector.extract_strided_slice %60 {offsets = [0, 32], sizes = [2, 32], strides = [1, 1]} : vector<2x128xf32> to vector<2x32xf32>
    %64 = vector.extract_strided_slice %61 {offsets = [0, 64], sizes = [2, 32], strides = [1, 1]} : vector<2x128xf32> to vector<2x32xf32>
    %65 = vector.extract_strided_slice %60 {offsets = [0, 96], sizes = [2, 32], strides = [1, 1]} : vector<2x128xf32> to vector<2x32xf32>
    %66 = arith.mulf %63, %50 : vector<2x32xf32>
    %67 = arith.mulf %62, %64 : vector<2x32xf32>
    %68 = arith.addf %66, %67 : vector<2x32xf32>
    %69 = math.tanh %68 : vector<2x32xf32>
    %70 = arith.mulf %65, %69 : vector<2x32xf32>
    %71 = vector.extract_strided_slice %6 {offsets = [4, 0], sizes = [2, 128], strides = [1, 1]} : vector<16x128xf32> to vector<2x128xf32>
    %cst_26 = arith.constant dense<0.000000e+00> : vector<2x128xf32>
    %72 = tpu.matmul %70, %8, %cst_26 {dimension_numbers = #tpu.dot_dimension_numbers<[1], [0], [0], [1], [0, 0, 1, 1], [], []>} : vector<2x32xf32>, vector<32x128xf32>, vector<2x128xf32> -> vector<2x128xf32>
    %73 = arith.addf %71, %72 : vector<2x128xf32>
    %74 = arith.negf %73 : vector<2x128xf32>
    %75 = math.exp %74 : vector<2x128xf32>
    %cst_27 = arith.constant 1.000000e+00 : f32
    %76 = vector.broadcast %cst_27 : f32 to vector<2x128xf32>
    %77 = arith.addf %76, %75 : vector<2x128xf32>
    %78 = arith.divf %76, %77 : vector<2x128xf32>
    %79 = math.tanh %73 : vector<2x128xf32>
    %80 = vector.extract_strided_slice %78 {offsets = [0, 0], sizes = [2, 32], strides = [1, 1]} : vector<2x128xf32> to vector<2x32xf32>
    %81 = vector.extract_strided_slice %78 {offsets = [0, 32], sizes = [2, 32], strides = [1, 1]} : vector<2x128xf32> to vector<2x32xf32>
    %82 = vector.extract_strided_slice %79 {offsets = [0, 64], sizes = [2, 32], strides = [1, 1]} : vector<2x128xf32> to vector<2x32xf32>
    %83 = vector.extract_strided_slice %78 {offsets = [0, 96], sizes = [2, 32], strides = [1, 1]} : vector<2x128xf32> to vector<2x32xf32>
    %84 = arith.mulf %81, %68 : vector<2x32xf32>
    %85 = arith.mulf %80, %82 : vector<2x32xf32>
    %86 = arith.addf %84, %85 : vector<2x32xf32>
    %87 = math.tanh %86 : vector<2x32xf32>
    %88 = arith.mulf %83, %87 : vector<2x32xf32>
    %89 = vector.extract_strided_slice %6 {offsets = [6, 0], sizes = [2, 128], strides = [1, 1]} : vector<16x128xf32> to vector<2x128xf32>
    %cst_28 = arith.constant dense<0.000000e+00> : vector<2x128xf32>
    %90 = tpu.matmul %88, %8, %cst_28 {dimension_numbers = #tpu.dot_dimension_numbers<[1], [0], [0], [1], [0, 0, 1, 1], [], []>} : vector<2x32xf32>, vector<32x128xf32>, vector<2x128xf32> -> vector<2x128xf32>
    %91 = arith.addf %89, %90 : vector<2x128xf32>
    %92 = arith.negf %91 : vector<2x128xf32>
    %93 = math.exp %92 : vector<2x128xf32>
    %cst_29 = arith.constant 1.000000e+00 : f32
    %94 = vector.broadcast %cst_29 : f32 to vector<2x128xf32>
    %95 = arith.addf %94, %93 : vector<2x128xf32>
    %96 = arith.divf %94, %95 : vector<2x128xf32>
    %97 = math.tanh %91 : vector<2x128xf32>
    %98 = vector.extract_strided_slice %96 {offsets = [0, 0], sizes = [2, 32], strides = [1, 1]} : vector<2x128xf32> to vector<2x32xf32>
    %99 = vector.extract_strided_slice %96 {offsets = [0, 32], sizes = [2, 32], strides = [1, 1]} : vector<2x128xf32> to vector<2x32xf32>
    %100 = vector.extract_strided_slice %97 {offsets = [0, 64], sizes = [2, 32], strides = [1, 1]} : vector<2x128xf32> to vector<2x32xf32>
    %101 = vector.extract_strided_slice %96 {offsets = [0, 96], sizes = [2, 32], strides = [1, 1]} : vector<2x128xf32> to vector<2x32xf32>
    %102 = arith.mulf %99, %86 : vector<2x32xf32>
    %103 = arith.mulf %98, %100 : vector<2x32xf32>
    %104 = arith.addf %102, %103 : vector<2x32xf32>
    %105 = math.tanh %104 : vector<2x32xf32>
    %106 = arith.mulf %101, %105 : vector<2x32xf32>
    %107 = vector.extract_strided_slice %6 {offsets = [8, 0], sizes = [2, 128], strides = [1, 1]} : vector<16x128xf32> to vector<2x128xf32>
    %cst_30 = arith.constant dense<0.000000e+00> : vector<2x128xf32>
    %108 = tpu.matmul %106, %8, %cst_30 {dimension_numbers = #tpu.dot_dimension_numbers<[1], [0], [0], [1], [0, 0, 1, 1], [], []>} : vector<2x32xf32>, vector<32x128xf32>, vector<2x128xf32> -> vector<2x128xf32>
    %109 = arith.addf %107, %108 : vector<2x128xf32>
    %110 = arith.negf %109 : vector<2x128xf32>
    %111 = math.exp %110 : vector<2x128xf32>
    %cst_31 = arith.constant 1.000000e+00 : f32
    %112 = vector.broadcast %cst_31 : f32 to vector<2x128xf32>
    %113 = arith.addf %112, %111 : vector<2x128xf32>
    %114 = arith.divf %112, %113 : vector<2x128xf32>
    %115 = math.tanh %109 : vector<2x128xf32>
    %116 = vector.extract_strided_slice %114 {offsets = [0, 0], sizes = [2, 32], strides = [1, 1]} : vector<2x128xf32> to vector<2x32xf32>
    %117 = vector.extract_strided_slice %114 {offsets = [0, 32], sizes = [2, 32], strides = [1, 1]} : vector<2x128xf32> to vector<2x32xf32>
    %118 = vector.extract_strided_slice %115 {offsets = [0, 64], sizes = [2, 32], strides = [1, 1]} : vector<2x128xf32> to vector<2x32xf32>
    %119 = vector.extract_strided_slice %114 {offsets = [0, 96], sizes = [2, 32], strides = [1, 1]} : vector<2x128xf32> to vector<2x32xf32>
    %120 = arith.mulf %117, %104 : vector<2x32xf32>
    %121 = arith.mulf %116, %118 : vector<2x32xf32>
    %122 = arith.addf %120, %121 : vector<2x32xf32>
    %123 = math.tanh %122 : vector<2x32xf32>
    %124 = arith.mulf %119, %123 : vector<2x32xf32>
    %125 = vector.extract_strided_slice %6 {offsets = [10, 0], sizes = [2, 128], strides = [1, 1]} : vector<16x128xf32> to vector<2x128xf32>
    %cst_32 = arith.constant dense<0.000000e+00> : vector<2x128xf32>
    %126 = tpu.matmul %124, %8, %cst_32 {dimension_numbers = #tpu.dot_dimension_numbers<[1], [0], [0], [1], [0, 0, 1, 1], [], []>} : vector<2x32xf32>, vector<32x128xf32>, vector<2x128xf32> -> vector<2x128xf32>
    %127 = arith.addf %125, %126 : vector<2x128xf32>
    %128 = arith.negf %127 : vector<2x128xf32>
    %129 = math.exp %128 : vector<2x128xf32>
    %cst_33 = arith.constant 1.000000e+00 : f32
    %130 = vector.broadcast %cst_33 : f32 to vector<2x128xf32>
    %131 = arith.addf %130, %129 : vector<2x128xf32>
    %132 = arith.divf %130, %131 : vector<2x128xf32>
    %133 = math.tanh %127 : vector<2x128xf32>
    %134 = vector.extract_strided_slice %132 {offsets = [0, 0], sizes = [2, 32], strides = [1, 1]} : vector<2x128xf32> to vector<2x32xf32>
    %135 = vector.extract_strided_slice %132 {offsets = [0, 32], sizes = [2, 32], strides = [1, 1]} : vector<2x128xf32> to vector<2x32xf32>
    %136 = vector.extract_strided_slice %133 {offsets = [0, 64], sizes = [2, 32], strides = [1, 1]} : vector<2x128xf32> to vector<2x32xf32>
    %137 = vector.extract_strided_slice %132 {offsets = [0, 96], sizes = [2, 32], strides = [1, 1]} : vector<2x128xf32> to vector<2x32xf32>
    %138 = arith.mulf %135, %122 : vector<2x32xf32>
    %139 = arith.mulf %134, %136 : vector<2x32xf32>
    %140 = arith.addf %138, %139 : vector<2x32xf32>
    %141 = math.tanh %140 : vector<2x32xf32>
    %142 = arith.mulf %137, %141 : vector<2x32xf32>
    %143 = vector.extract_strided_slice %6 {offsets = [12, 0], sizes = [2, 128], strides = [1, 1]} : vector<16x128xf32> to vector<2x128xf32>
    %cst_34 = arith.constant dense<0.000000e+00> : vector<2x128xf32>
    %144 = tpu.matmul %142, %8, %cst_34 {dimension_numbers = #tpu.dot_dimension_numbers<[1], [0], [0], [1], [0, 0, 1, 1], [], []>} : vector<2x32xf32>, vector<32x128xf32>, vector<2x128xf32> -> vector<2x128xf32>
    %145 = arith.addf %143, %144 : vector<2x128xf32>
    %146 = arith.negf %145 : vector<2x128xf32>
    %147 = math.exp %146 : vector<2x128xf32>
    %cst_35 = arith.constant 1.000000e+00 : f32
    %148 = vector.broadcast %cst_35 : f32 to vector<2x128xf32>
    %149 = arith.addf %148, %147 : vector<2x128xf32>
    %150 = arith.divf %148, %149 : vector<2x128xf32>
    %151 = math.tanh %145 : vector<2x128xf32>
    %152 = vector.extract_strided_slice %150 {offsets = [0, 0], sizes = [2, 32], strides = [1, 1]} : vector<2x128xf32> to vector<2x32xf32>
    %153 = vector.extract_strided_slice %150 {offsets = [0, 32], sizes = [2, 32], strides = [1, 1]} : vector<2x128xf32> to vector<2x32xf32>
    %154 = vector.extract_strided_slice %151 {offsets = [0, 64], sizes = [2, 32], strides = [1, 1]} : vector<2x128xf32> to vector<2x32xf32>
    %155 = vector.extract_strided_slice %150 {offsets = [0, 96], sizes = [2, 32], strides = [1, 1]} : vector<2x128xf32> to vector<2x32xf32>
    %156 = arith.mulf %153, %140 : vector<2x32xf32>
    %157 = arith.mulf %152, %154 : vector<2x32xf32>
    %158 = arith.addf %156, %157 : vector<2x32xf32>
    %159 = math.tanh %158 : vector<2x32xf32>
    %160 = arith.mulf %155, %159 : vector<2x32xf32>
    %161 = vector.extract_strided_slice %6 {offsets = [14, 0], sizes = [2, 128], strides = [1, 1]} : vector<16x128xf32> to vector<2x128xf32>
    %cst_36 = arith.constant dense<0.000000e+00> : vector<2x128xf32>
    %162 = tpu.matmul %160, %8, %cst_36 {dimension_numbers = #tpu.dot_dimension_numbers<[1], [0], [0], [1], [0, 0, 1, 1], [], []>} : vector<2x32xf32>, vector<32x128xf32>, vector<2x128xf32> -> vector<2x128xf32>
    %163 = arith.addf %161, %162 : vector<2x128xf32>
    %164 = arith.negf %163 : vector<2x128xf32>
    %165 = math.exp %164 : vector<2x128xf32>
    %cst_37 = arith.constant 1.000000e+00 : f32
    %166 = vector.broadcast %cst_37 : f32 to vector<2x128xf32>
    %167 = arith.addf %166, %165 : vector<2x128xf32>
    %168 = arith.divf %166, %167 : vector<2x128xf32>
    %169 = math.tanh %163 : vector<2x128xf32>
    %170 = vector.extract_strided_slice %168 {offsets = [0, 0], sizes = [2, 32], strides = [1, 1]} : vector<2x128xf32> to vector<2x32xf32>
    %171 = vector.extract_strided_slice %168 {offsets = [0, 32], sizes = [2, 32], strides = [1, 1]} : vector<2x128xf32> to vector<2x32xf32>
    %172 = vector.extract_strided_slice %169 {offsets = [0, 64], sizes = [2, 32], strides = [1, 1]} : vector<2x128xf32> to vector<2x32xf32>
    %173 = vector.extract_strided_slice %168 {offsets = [0, 96], sizes = [2, 32], strides = [1, 1]} : vector<2x128xf32> to vector<2x32xf32>
    %174 = arith.mulf %171, %158 : vector<2x32xf32>
    %175 = arith.mulf %170, %172 : vector<2x32xf32>
    %176 = arith.addf %174, %175 : vector<2x32xf32>
    %177 = math.tanh %176 : vector<2x32xf32>
    %178 = arith.mulf %173, %177 : vector<2x32xf32>
    %179 = tpu.concatenate %178, %30 in 1 : vector<2x32xf32>, vector<2x32xf32> -> vector<2x64xf32>
    %cst_38 = arith.constant 0.000000e+00 : f32
    %180 = vector.broadcast %cst_38 : f32 to vector<2x64xf32>
    %181 = arith.maximumf %179, %180 : vector<2x64xf32>
    %c0_39 = arith.constant 0 : index
    %c0_40 = arith.constant 0 : index
    %182 = vector.load %arg7[%c0_39, %c0_40] : memref<2x64xf32, #tpu.memory_space<vmem>>, vector<2x64xf32>
    tpu.vector_store %arg7[%c0_39, %c0_40], %181 {strides = array<i32>} : memref<2x64xf32, #tpu.memory_space<vmem>>, vector<2x64xf32>,
    return
  }
}

</mosaic_0001>

<llo_original>
// kernel: tpu_custom_call.1
$region0: #{tpu_custom_call.1}
  #allocation0 [shape = 'u32[]', space=smem, size = 0x4, offset = 0x4, fixed_abs, tag = 'smem constant byte address 0x4 - core index']
  #allocation1 [shape = 'u32[72,128]{1,0:T(1,128)}', space=vmem, size = 0x9000, scoped, tag = 'internal scratch']
  %s0 = inlined_call_operand.hbm [shape: f32[16,32], index: 0, kind: input, shape index: {}]
  %s1 = inlined_call_operand.hbm [shape: f32[32,256], index: 1, kind: input, shape index: {}]
  %s2 = inlined_call_operand.hbm [shape: f32[1,256], index: 2, kind: input, shape index: {}]
  %s3 = inlined_call_operand.hbm [shape: f32[32,128], index: 3, kind: input, shape index: {}]
  %s4 = inlined_call_operand.hbm [shape: f32[32,128], index: 4, kind: input, shape index: {}]
  %s5 = inlined_call_operand.vmem [shape: f32[2,2,32], index: 5, kind: input, shape index: {}]
  %s6 = inlined_call_operand.hbm [shape: f32[2,2,32], index: 6, kind: input, shape index: {}]
  %s7 = inlined_call_operand.hbm [shape: f32[2,64], index: 7, kind: output, shape index: {}]
  %s8 = sld [smem:[#allocation0]]
  $region62: #{tpu_custom_call.1} parent=0
    _
  %s10 = ssub.s32 1, %s8
  %s11 = scalar_select 0, %s10, %s8
  $region1: #{tpu_custom_call.1} parent=0
    #allocation2 [shape = 'u8[8192]{0}', space=vmem, size = 0x2000, scoped, tag = 'input window, operand 0, single buffered']
    #allocation3 [shape = 's32[1]{0}', space=sflag, size = 0x4, scoped, tag = 'scoped memory for tpu_custom_call.1']
    #allocation4 [shape = 's32[1]{0}', space=sflag, size = 0x4, scoped, tag = 'scoped memory for tpu_custom_call.1']
    #allocation5 [shape = 'u8[32768]{0}', space=vmem, size = 0x8000, scoped, tag = 'input window, operand 1, single buffered']
    #allocation6 [shape = 's32[1]{0}', space=sflag, size = 0x4, scoped, tag = 'scoped memory for tpu_custom_call.1']
    #allocation7 [shape = 'u8[1024]{0}', space=vmem, size = 0x400, scoped, tag = 'input window, operand 2, single buffered']
    #allocation8 [shape = 'u8[16384]{0}', space=vmem, size = 0x4000, scoped, tag = 'input window, operand 3, single buffered']
    #allocation9 [shape = 's32[1]{0}', space=sflag, size = 0x4, scoped, tag = 'scoped memory for tpu_custom_call.1']
    #allocation10 [shape = 'u8[16384]{0}', space=vmem, size = 0x4000, scoped, tag = 'input window, operand 4, single buffered']
    #allocation11 [shape = 'u8[2048]{0}', space=vmem, size = 0x800, scoped, tag = 'input window, operand 6, single buffered']
    #allocation12 [shape = 's32[1]{0}', space=sflag, size = 0x4, scoped, tag = 'scoped memory for tpu_custom_call.1']
    #allocation13 [shape = 'u8[1024]{0}', space=vmem, size = 0x400, scoped, tag = 'output window, operand 0, single buffered']
    %12 = vsyncpa [#allocation3], 0
    %13 = vsyncpa [#allocation6], 0
    %14 = vsyncpa [#allocation9], 0
    %15 = vsyncpa [#allocation12], 0
    %16 = vsyncpa [#allocation4], 0
    // Predicated region
    $region2: #{tpu_custom_call.1} parent=1 // pred_check
      _
    $region3: #{tpu_custom_call.1} parent=1 // pred_check_branch
      %18 = sbr.rel (0) target = $region5
    $region4: #{tpu_custom_call.1} parent=1 // pred_region
      %20 = vsyncadd [#allocation3], 0
      %s21 = sshll.u32 %s0, 4
      %s22 = int_to_ptr.hbm [resolvable:$true] %s21
      %s23 = sshll.u32 [#allocation2], 4
      %s24 = int_to_ptr.vmem [resolvable:$true] %s23
      %29 = dma.hbm_to_vmem [thread:$0]  %s22, 256, %s24, [#allocation3], 128, 128, 8
    $region5: #{tpu_custom_call.1} parent=1 // pred_fallthru
      _
    // Predicated region
    $region6: #{tpu_custom_call.1} parent=1 // pred_check
      _
    $region7: #{tpu_custom_call.1} parent=1 // pred_check_branch
      %31 = sbr.rel (0) target = $region9
    $region8: #{tpu_custom_call.1} parent=1 // pred_region
      %33 = vsyncadd [#allocation6], 0
      %s34 = sshll.u32 %s1, 4
      %s35 = int_to_ptr.hbm [resolvable:$true] %s34
      %s36 = sshll.u32 [#allocation5], 4
      %s37 = int_to_ptr.vmem [resolvable:$true] %s36
      %42 = dma.hbm_to_vmem [thread:$0]  %s35, 1024, %s37, [#allocation6], 256, 256, 16
    $region9: #{tpu_custom_call.1} parent=1 // pred_fallthru
      _
    // Predicated region
    $region10: #{tpu_custom_call.1} parent=1 // pred_check
      _
    $region11: #{tpu_custom_call.1} parent=1 // pred_check_branch
      %44 = sbr.rel (0) target = $region13
    $region12: #{tpu_custom_call.1} parent=1 // pred_region
      %46 = vsyncadd [#allocation6], 0
      %s48 = sshll.u32 %s2, 4
      %s49 = int_to_ptr.hbm [resolvable:$true] %s48
      %s50 = sshll.u32 [#allocation7], 4
      %s51 = int_to_ptr.vmem [resolvable:$true] %s50
      %53 = dma.hbm_to_vmem [thread:$0]  %s49, 32, %s51, [#allocation6]
    $region13: #{tpu_custom_call.1} parent=1 // pred_fallthru
      _
    // Predicated region
    $region14: #{tpu_custom_call.1} parent=1 // pred_check
      _
    $region15: #{tpu_custom_call.1} parent=1 // pred_check_branch
      %55 = sbr.rel (0) target = $region17
    $region16: #{tpu_custom_call.1} parent=1 // pred_region
      %57 = vsyncadd [#allocation9], 0
      %s58 = sshll.u32 %s3, 4
      %s59 = int_to_ptr.hbm [resolvable:$true] %s58
      %s60 = sshll.u32 [#allocation8], 4
      %s61 = int_to_ptr.vmem [resolvable:$true] %s60
      %66 = dma.hbm_to_vmem [thread:$0]  %s59, 512, %s61, [#allocation9], 128, 128, 8
    $region17: #{tpu_custom_call.1} parent=1 // pred_fallthru
      _
    // Predicated region
    $region18: #{tpu_custom_call.1} parent=1 // pred_check
      _
    $region19: #{tpu_custom_call.1} parent=1 // pred_check_branch
      %68 = sbr.rel (0) target = $region21
    $region20: #{tpu_custom_call.1} parent=1 // pred_region
      %70 = vsyncadd [#allocation9], 0
      %s71 = sshll.u32 %s4, 4
      %s72 = int_to_ptr.hbm [resolvable:$true] %s71
      %s73 = sshll.u32 [#allocation10], 4
      %s74 = int_to_ptr.vmem [resolvable:$true] %s73
      %79 = dma.hbm_to_vmem [thread:$0]  %s72, 512, %s74, [#allocation9], 128, 128, 8
    $region21: #{tpu_custom_call.1} parent=1 // pred_fallthru
      _
    // Predicated region
    $region22: #{tpu_custom_call.1} parent=1 // pred_check
      _
    $region23: #{tpu_custom_call.1} parent=1 // pred_check_branch
      %81 = sbr.rel (0) target = $region25
    $region24: #{tpu_custom_call.1} parent=1 // pred_region
      _
    $region25: #{tpu_custom_call.1} parent=1 // pred_fallthru
      _
    // Predicated region
    $region26: #{tpu_custom_call.1} parent=1 // pred_check
      _
    $region27: #{tpu_custom_call.1} parent=1 // pred_check_branch
      %83 = sbr.rel (0) target = $region29
    $region28: #{tpu_custom_call.1} parent=1 // pred_region
      %85 = vsyncadd [#allocation12], 0
      %s86 = sshll.u32 %s6, 4
      %s87 = int_to_ptr.hbm [resolvable:$true] %s86
      %s88 = sshll.u32 [#allocation11], 4
      %s89 = int_to_ptr.vmem [resolvable:$true] %s88
      %94 = dma.hbm_to_vmem [thread:$0]  %s87, 64, %s89, [#allocation12], 32, 32, 2
    $region29: #{tpu_custom_call.1} parent=1 // pred_fallthru
      _
    // Predicated region
    $region30: #{tpu_custom_call.1} parent=1 // pred_check
      _
    $region31: #{tpu_custom_call.1} parent=1 // pred_check_branch
      %96 = sbr.rel (0) target = $region33
    $region32: #{tpu_custom_call.1} parent=1 // pred_region
      %98 = dma.done [#allocation3], 256
    $region33: #{tpu_custom_call.1} parent=1 // pred_fallthru
      _
    // Predicated region
    $region34: #{tpu_custom_call.1} parent=1 // pred_check
      _
    $region35: #{tpu_custom_call.1} parent=1 // pred_check_branch
      %100 = sbr.rel (0) target = $region37
    $region36: #{tpu_custom_call.1} parent=1 // pred_region
      %102 = dma.done [#allocation6], 1024
    $region37: #{tpu_custom_call.1} parent=1 // pred_fallthru
      _
    // Predicated region
    $region38: #{tpu_custom_call.1} parent=1 // pred_check
      _
    $region39: #{tpu_custom_call.1} parent=1 // pred_check_branch
      %104 = sbr.rel (0) target = $region41
    $region40: #{tpu_custom_call.1} parent=1 // pred_region
      %106 = dma.done [#allocation6], 32
    $region41: #{tpu_custom_call.1} parent=1 // pred_fallthru
      _
    // Predicated region
    $region42: #{tpu_custom_call.1} parent=1 // pred_check
      _
    $region43: #{tpu_custom_call.1} parent=1 // pred_check_branch
      %108 = sbr.rel (0) target = $region45
    $region44: #{tpu_custom_call.1} parent=1 // pred_region
      %110 = dma.done [#allocation9], 512
    $region45: #{tpu_custom_call.1} parent=1 // pred_fallthru
      _
    // Predicated region
    $region46: #{tpu_custom_call.1} parent=1 // pred_check
      _
    $region47: #{tpu_custom_call.1} parent=1 // pred_check_branch
      %112 = sbr.rel (0) target = $region49
    $region48: #{tpu_custom_call.1} parent=1 // pred_region
      %114 = dma.done [#allocation9], 512
    $region49: #{tpu_custom_call.1} parent=1 // pred_fallthru
      _
    // Predicated region
    $region50: #{tpu_custom_call.1} parent=1 // pred_check
      _
    $region51: #{tpu_custom_call.1} parent=1 // pred_check_branch
      %116 = sbr.rel (0) target = $region53
    $region52: #{tpu_custom_call.1} parent=1 // pred_region
      %118 = dma.done [#allocation12], 64
    $region53: #{tpu_custom_call.1} parent=1 // pred_fallthru
      _
    %v119 = vld [vmem:[#allocation2] sm:$0xff]
    %v120 = vld [vmem:[#allocation2 + $0x8] sm:$0xff]
    %v121 = vld [vmem:[#allocation5] sm:$0xff]
    %v122 = vld [vmem:[#allocation5 + $0x8] sm:$0xff]
    %v123 = vld [vmem:[#allocation5 + $0x10] sm:$0xff]
    %v124 = vld [vmem:[#allocation5 + $0x18] sm:$0xff]
    %v125 = vld [vmem:[#allocation5 + $0x20] sm:$0xff]
    %v126 = vld [vmem:[#allocation5 + $0x28] sm:$0xff]
    %v127 = vld [vmem:[#allocation5 + $0x30] sm:$0xff]
    %v128 = vld [vmem:[#allocation5 + $0x38] sm:$0xff]
    %v129 = vld [vmem:[#allocation7] sm:$0x3]
    %v131 = vperm.slane %v129, 0
    %v132 = vperm.slane %v129, 1
    %vm135 = vcmask 261120
    %v137 = vsel %vm135, %v119, 0
    %v140 = vsel %vm135, %v120, 0
    %142 = vmatpush.msra.mxu0 0.0
    %143 = vmatpush.msra.mxu0 0.0
    %144 = vmatpush.msra.mxu0 0.0
    %145 = vmatpush.msra.mxu0 0.0
    %146 = vmatpush.msra.mxu0 0.0
    %147 = vmatpush.msra.mxu0 0.0
    %148 = vmatpush.msra.mxu0 0.0
    %149 = vmatpush.msra.mxu0 0.0
    %150 = vmatpush.msra.mxu0 0.0
    %151 = vmatpush.msra.mxu0 0.0
    %152 = vmatpush.msra.mxu0 0.0
    %153 = vmatpush.msra.mxu0 0.0
    %154 = vmatpush.msra.mxu0 %v127
    %155 = vmatpush.msra.mxu0 %v125
    %156 = vmatpush.msra.mxu0 %v123
    %157 = vmatpush.msra.mxu0 %v121
    %158 = vmatmul.f32.gmra.mxu0 %v137
    %v159 = vpop.f32.mrf.mxu0
    %v160 = vadd.f32 %v131, %v159
    %161 = vmatmul.f32.gmra.mxu0 %v140
    %v162 = vpop.f32.mrf.mxu0
    %v163 = vadd.f32 %v131, %v162
    %164 = vdwg.mxu0
    %165 = vmatpush.msra.mxu0 0.0
    %166 = vmatpush.msra.mxu0 0.0
    %167 = vmatpush.msra.mxu0 0.0
    %168 = vmatpush.msra.mxu0 0.0
    %169 = vmatpush.msra.mxu0 0.0
    %170 = vmatpush.msra.mxu0 0.0
    %171 = vmatpush.msra.mxu0 0.0
    %172 = vmatpush.msra.mxu0 0.0
    %173 = vmatpush.msra.mxu0 0.0
    %174 = vmatpush.msra.mxu0 0.0
    %175 = vmatpush.msra.mxu0 0.0
    %176 = vmatpush.msra.mxu0 0.0
    %177 = vmatpush.msra.mxu0 %v128
    %178 = vmatpush.msra.mxu0 %v126
    %179 = vmatpush.msra.mxu0 %v124
    %180 = vmatpush.msra.mxu0 %v122
    %181 = vmatmul.f32.gmra.mxu0 %v137
    %v182 = vpop.f32.mrf.mxu0
    %183 = vmatmul.f32.gmra.mxu0 %v140
    %v184 = vpop.f32.mrf.mxu0
    %v185 = vadd.f32 %v132, %v184
    %186 = vdwg.mxu0
    %v187 = vld [vmem:[#allocation8] sm:$0xff]
    %v188 = vld [vmem:[#allocation8 + $0x8] sm:$0xff]
    %v189 = vld [vmem:[#allocation8 + $0x10] sm:$0xff]
    %v190 = vld [vmem:[#allocation8 + $0x18] sm:$0xff]
    %v191 = vld [vmem:[#allocation10] sm:$0xff]
    %v192 = vld [vmem:[#allocation10 + $0x8] sm:$0xff]
    %v193 = vld [vmem:[#allocation10 + $0x10] sm:$0xff]
    %v194 = vld [vmem:[#allocation10 + $0x18] sm:$0xff]
    %s195 = scalar_lea.vmem %s5, 2
    %v196 = vld [vmem:[%s195] sm:$0x3]
    %v198 = vsel %vm135, %v196, 0
    %200 = vmatpush.msra.mxu0 0.0
    %201 = vmatpush.msra.mxu0 0.0
    %202 = vmatpush.msra.mxu0 0.0
    %203 = vmatpush.msra.mxu0 0.0
    %204 = vmatpush.msra.mxu0 0.0
    %205 = vmatpush.msra.mxu0 0.0
    %206 = vmatpush.msra.mxu0 0.0
    %207 = vmatpush.msra.mxu0 0.0
    %208 = vmatpush.msra.mxu0 0.0
    %209 = vmatpush.msra.mxu0 0.0
    %210 = vmatpush.msra.mxu0 0.0
    %211 = vmatpush.msra.mxu0 0.0
    %212 = vmatpush.msra.mxu0 %v194
    %213 = vmatpush.msra.mxu0 %v193
    %214 = vmatpush.msra.mxu0 %v192
    %215 = vmatpush.msra.mxu0 %v191
    %216 = vmatmul.f32.gmra.mxu0 %v198
    %v217 = vpop.f32.mrf.mxu0
    %v218 = vadd.f32 0.0, %v217
    %219 = vdwg.mxu0
    %v221 = vrot.slane %v218, 2
    %v223 = vadd.f32 %v185, %v221
    %v224 = vxor.u32 %v223, 2147483648
    %v225 = vmul.f32 %v224, 1.442695
    %v226 = vpow.pop %v225
    %v227 = vadd.f32 %v226, 1.0
    %v228 = vrcp.pop %v227
    %v229 = vmul.f32 %v227, %v228
    %v230 = vsub.f32 1.0, %v229
    %v231 = vmul.f32 %v228, %v230
    %v232 = vadd.f32 %v228, %v231
    %vm233 = vweird.f32 %v227
    %vm234 = vweird.f32 %v228
    %vm235 = vmor %vm233, %vm234
    %v236 = vsel %vm235, %v228, %v232
    %v237 = vand.u32 2147483647, %v227
    %vm238 = vcmp.eq.f32.partialorder %v237, 8.507059e+37
    %v239 = vand.u32 %v227, 2147483648
    %v240 = vor.u32 1.1754944e-38, %v239
    %v241 = vsel %vm238, %v240, %v236
    %v242 = vmul.f32 1.0, %v241
    %v243 = vtanh.pop %v223
    %s244 = scalar_lea.vmem [#allocation11], 2
    %v245 = vld [vmem:[%s244] sm:$0x3]
    %v247 = vrot.slane %v245, 2
    %248 = vrot.lane.b32.xlu0 %v247, 32
    %v249 = vpop.permute.xlu0 %248
    %v251 = vmul.f32 %v242, %v249
    %253 = vrot.lane.b32.xlu0 %v243, 64
    %v254 = vpop.permute.xlu0 %253
    %v256 = vmul.f32 %v242, %v254
    %258 = vrot.lane.b32.xlu0 %v256, 32
    %v259 = vpop.permute.xlu0 %258
    %v261 = vadd.f32 %v251, %v259
    %v262 = vtanh.pop %v261
    %264 = vrot.lane.b32.xlu0 %v262, 64
    %v265 = vpop.permute.xlu0 %264
    %v267 = vmul.f32 %v242, %v265
    %v268 = vld [vmem:[%s5] sm:$0x3]
    %v269 = vld [vmem:[#allocation11] sm:$0x3]
    %v271 = vsel %vm135, %v268, 0
    %273 = vmatpush.msra.mxu0 0.0
    %274 = vmatpush.msra.mxu0 0.0
    %275 = vmatpush.msra.mxu0 0.0
    %276 = vmatpush.msra.mxu0 0.0
    %277 = vmatpush.msra.mxu0 0.0
    %278 = vmatpush.msra.mxu0 0.0
    %279 = vmatpush.msra.mxu0 0.0
    %280 = vmatpush.msra.mxu0 0.0
    %281 = vmatpush.msra.mxu0 0.0
    %282 = vmatpush.msra.mxu0 0.0
    %283 = vmatpush.msra.mxu0 0.0
    %284 = vmatpush.msra.mxu0 0.0
    %285 = vmatpush.msra.mxu0 %v190
    %286 = vmatpush.msra.mxu0 %v189
    %287 = vmatpush.msra.mxu0 %v188
    %288 = vmatpush.msra.mxu0 %v187
    %289 = vmatmul.f32.gmra.mxu0 %v271
    %v290 = vpop.f32.mrf.mxu0
    %v291 = vadd.f32 0.0, %v290
    %292 = vdwg.mxu0
    %v293 = vadd.f32 %v160, %v291
    %v294 = vxor.u32 %v293, 2147483648
    %v295 = vmul.f32 %v294, 1.442695
    %v296 = vpow.pop %v295
    %v297 = vadd.f32 %v296, 1.0
    %v298 = vrcp.pop %v297
    %v299 = vmul.f32 %v297, %v298
    %v300 = vsub.f32 1.0, %v299
    %v301 = vmul.f32 %v298, %v300
    %v302 = vadd.f32 %v298, %v301
    %vm303 = vweird.f32 %v297
    %vm304 = vweird.f32 %v298
    %vm305 = vmor %vm303, %vm304
    %v306 = vsel %vm305, %v298, %v302
    %v307 = vand.u32 2147483647, %v297
    %vm308 = vcmp.eq.f32.partialorder %v307, 8.507059e+37
    %v309 = vand.u32 %v297, 2147483648
    %v310 = vor.u32 1.1754944e-38, %v309
    %v311 = vsel %vm308, %v310, %v306
    %v312 = vmul.f32 1.0, %v311
    %v313 = vtanh.pop %v293
    %315 = vrot.lane.b32.xlu0 %v269, 32
    %v316 = vpop.permute.xlu0 %315
    %v318 = vmul.f32 %v312, %v316
    %320 = vrot.lane.b32.xlu0 %v313, 64
    %v321 = vpop.permute.xlu0 %320
    %v323 = vmul.f32 %v312, %v321
    %325 = vrot.lane.b32.xlu0 %v323, 32
    %v326 = vpop.permute.xlu0 %325
    %v328 = vadd.f32 %v318, %v326
    %v329 = vtanh.pop %v328
    %331 = vrot.lane.b32.xlu0 %v329, 64
    %v332 = vpop.permute.xlu0 %331
    %v334 = vmul.f32 %v312, %v332
    %336 = vrot.lane.b32.xlu0 %v334, 32
    %v337 = vpop.permute.xlu0 %336
    %v338 = vsel %vm135, %v337, 0
    %340 = vmatpush.msra.mxu0 0.0
    %341 = vmatpush.msra.mxu0 0.0
    %342 = vmatpush.msra.mxu0 0.0
    %343 = vmatpush.msra.mxu0 0.0
    %344 = vmatpush.msra.mxu0 0.0
    %345 = vmatpush.msra.mxu0 0.0
    %346 = vmatpush.msra.mxu0 0.0
    %347 = vmatpush.msra.mxu0 0.0
    %348 = vmatpush.msra.mxu0 0.0
    %349 = vmatpush.msra.mxu0 0.0
    %350 = vmatpush.msra.mxu0 0.0
    %351 = vmatpush.msra.mxu0 0.0
    %352 = vmatpush.msra.mxu0 %v190
    %353 = vmatpush.msra.mxu0 %v189
    %354 = vmatpush.msra.mxu0 %v188
    %355 = vmatpush.msra.mxu0 %v187
    %356 = vmatmul.f32.gmra.mxu0 %v338
    %v357 = vpop.f32.mrf.mxu0
    %v358 = vadd.f32 0.0, %v357
    %359 = vdwg.mxu0
    %v361 = vrot.slane %v358, 6
    %v363 = vadd.f32 %v160, %v361
    %v364 = vxor.u32 %v363, 2147483648
    %v365 = vmul.f32 %v364, 1.442695
    %v366 = vpow.pop %v365
    %v367 = vadd.f32 %v366, 1.0
    %v368 = vrcp.pop %v367
    %v369 = vmul.f32 %v367, %v368
    %v370 = vsub.f32 1.0, %v369
    %v371 = vmul.f32 %v368, %v370
    %v372 = vadd.f32 %v368, %v371
    %vm373 = vweird.f32 %v367
    %vm374 = vweird.f32 %v368
    %vm375 = vmor %vm373, %vm374
    %v376 = vsel %vm375, %v368, %v372
    %v377 = vand.u32 2147483647, %v367
    %vm378 = vcmp.eq.f32.partialorder %v377, 8.507059e+37
    %v379 = vand.u32 %v367, 2147483648
    %v380 = vor.u32 1.1754944e-38, %v379
    %v381 = vsel %vm378, %v380, %v376
    %v382 = vmul.f32 1.0, %v381
    %v383 = vtanh.pop %v363
    %v385 = vrot.slane %v328, 6
    %v387 = vmul.f32 %v382, %v385
    %389 = vrot.lane.b32.xlu0 %v383, 64
    %v390 = vpop.permute.xlu0 %389
    %v392 = vmul.f32 %v382, %v390
    %394 = vrot.lane.b32.xlu0 %v392, 32
    %v395 = vpop.permute.xlu0 %394
    %v397 = vadd.f32 %v387, %v395
    %v398 = vtanh.pop %v397
    %400 = vrot.lane.b32.xlu0 %v398, 64
    %v401 = vpop.permute.xlu0 %400
    %v403 = vmul.f32 %v382, %v401
    %v405 = vrot.slane %v403, 2
    %406 = vrot.lane.b32.xlu0 %v405, 32
    %v407 = vpop.permute.xlu0 %406
    %v408 = vsel %vm135, %v407, 0
    %410 = vmatpush.msra.mxu0 0.0
    %411 = vmatpush.msra.mxu0 0.0
    %412 = vmatpush.msra.mxu0 0.0
    %413 = vmatpush.msra.mxu0 0.0
    %414 = vmatpush.msra.mxu0 0.0
    %415 = vmatpush.msra.mxu0 0.0
    %416 = vmatpush.msra.mxu0 0.0
    %417 = vmatpush.msra.mxu0 0.0
    %418 = vmatpush.msra.mxu0 0.0
    %419 = vmatpush.msra.mxu0 0.0
    %420 = vmatpush.msra.mxu0 0.0
    %421 = vmatpush.msra.mxu0 0.0
    %422 = vmatpush.msra.mxu0 %v190
    %423 = vmatpush.msra.mxu0 %v189
    %424 = vmatpush.msra.mxu0 %v188
    %425 = vmatpush.msra.mxu0 %v187
    %426 = vmatmul.f32.gmra.mxu0 %v408
    %v427 = vpop.f32.mrf.mxu0
    %v428 = vadd.f32 0.0, %v427
    %429 = vdwg.mxu0
    %v431 = vrot.slane %v428, 4
    %v433 = vadd.f32 %v160, %v431
    %v434 = vxor.u32 %v433, 2147483648
    %v435 = vmul.f32 %v434, 1.442695
    %v436 = vpow.pop %v435
    %v437 = vadd.f32 %v436, 1.0
    %v438 = vrcp.pop %v437
    %v439 = vmul.f32 %v437, %v438
    %v440 = vsub.f32 1.0, %v439
    %v441 = vmul.f32 %v438, %v440
    %v442 = vadd.f32 %v438, %v441
    %vm443 = vweird.f32 %v437
    %vm444 = vweird.f32 %v438
    %vm445 = vmor %vm443, %vm444
    %v446 = vsel %vm445, %v438, %v442
    %v447 = vand.u32 2147483647, %v437
    %vm448 = vcmp.eq.f32.partialorder %v447, 8.507059e+37
    %v449 = vand.u32 %v437, 2147483648
    %v450 = vor.u32 1.1754944e-38, %v449
    %v451 = vsel %vm448, %v450, %v446
    %v452 = vmul.f32 1.0, %v451
    %v453 = vtanh.pop %v433
    %v455 = vrot.slane %v397, 6
    %v457 = vmul.f32 %v452, %v455
    %459 = vrot.lane.b32.xlu0 %v453, 64
    %v460 = vpop.permute.xlu0 %459
    %v462 = vmul.f32 %v452, %v460
    %464 = vrot.lane.b32.xlu0 %v462, 32
    %v465 = vpop.permute.xlu0 %464
    %v467 = vadd.f32 %v457, %v465
    %v468 = vtanh.pop %v467
    %470 = vrot.lane.b32.xlu0 %v468, 64
    %v471 = vpop.permute.xlu0 %470
    %v473 = vmul.f32 %v452, %v471
    %v475 = vrot.slane %v473, 4
    %476 = vrot.lane.b32.xlu0 %v475, 32
    %v477 = vpop.permute.xlu0 %476
    %v478 = vsel %vm135, %v477, 0
    %480 = vmatpush.msra.mxu0 0.0
    %481 = vmatpush.msra.mxu0 0.0
    %482 = vmatpush.msra.mxu0 0.0
    %483 = vmatpush.msra.mxu0 0.0
    %484 = vmatpush.msra.mxu0 0.0
    %485 = vmatpush.msra.mxu0 0.0
    %486 = vmatpush.msra.mxu0 0.0
    %487 = vmatpush.msra.mxu0 0.0
    %488 = vmatpush.msra.mxu0 0.0
    %489 = vmatpush.msra.mxu0 0.0
    %490 = vmatpush.msra.mxu0 0.0
    %491 = vmatpush.msra.mxu0 0.0
    %492 = vmatpush.msra.mxu0 %v190
    %493 = vmatpush.msra.mxu0 %v189
    %494 = vmatpush.msra.mxu0 %v188
    %495 = vmatpush.msra.mxu0 %v187
    %496 = vmatmul.f32.gmra.mxu0 %v478
    %v497 = vpop.f32.mrf.mxu0
    %v498 = vadd.f32 0.0, %v497
    %499 = vdwg.mxu0
    %v501 = vrot.slane %v498, 2
    %v503 = vadd.f32 %v160, %v501
    %v504 = vxor.u32 %v503, 2147483648
    %v505 = vmul.f32 %v504, 1.442695
    %v506 = vpow.pop %v505
    %v507 = vadd.f32 %v506, 1.0
    %v508 = vrcp.pop %v507
    %v509 = vmul.f32 %v507, %v508
    %v510 = vsub.f32 1.0, %v509
    %v511 = vmul.f32 %v508, %v510
    %v512 = vadd.f32 %v508, %v511
    %vm513 = vweird.f32 %v507
    %vm514 = vweird.f32 %v508
    %vm515 = vmor %vm513, %vm514
    %v516 = vsel %vm515, %v508, %v512
    %v517 = vand.u32 2147483647, %v507
    %vm518 = vcmp.eq.f32.partialorder %v517, 8.507059e+37
    %v519 = vand.u32 %v507, 2147483648
    %v520 = vor.u32 1.1754944e-38, %v519
    %v521 = vsel %vm518, %v520, %v516
    %v522 = vmul.f32 1.0, %v521
    %v523 = vtanh.pop %v503
    %v525 = vrot.slane %v467, 6
    %v527 = vmul.f32 %v522, %v525
    %529 = vrot.lane.b32.xlu0 %v523, 64
    %v530 = vpop.permute.xlu0 %529
    %v532 = vmul.f32 %v522, %v530
    %534 = vrot.lane.b32.xlu0 %v532, 32
    %v535 = vpop.permute.xlu0 %534
    %v537 = vadd.f32 %v527, %v535
    %v538 = vtanh.pop %v537
    %540 = vrot.lane.b32.xlu0 %v538, 64
    %v541 = vpop.permute.xlu0 %540
    %v543 = vmul.f32 %v522, %v541
    %v545 = vrot.slane %v543, 6
    %546 = vrot.lane.b32.xlu0 %v545, 32
    %v547 = vpop.permute.xlu0 %546
    %v548 = vsel %vm135, %v547, 0
    %550 = vmatpush.msra.mxu0 0.0
    %551 = vmatpush.msra.mxu0 0.0
    %552 = vmatpush.msra.mxu0 0.0
    %553 = vmatpush.msra.mxu0 0.0
    %554 = vmatpush.msra.mxu0 0.0
    %555 = vmatpush.msra.mxu0 0.0
    %556 = vmatpush.msra.mxu0 0.0
    %557 = vmatpush.msra.mxu0 0.0
    %558 = vmatpush.msra.mxu0 0.0
    %559 = vmatpush.msra.mxu0 0.0
    %560 = vmatpush.msra.mxu0 0.0
    %561 = vmatpush.msra.mxu0 0.0
    %562 = vmatpush.msra.mxu0 %v190
    %563 = vmatpush.msra.mxu0 %v189
    %564 = vmatpush.msra.mxu0 %v188
    %565 = vmatpush.msra.mxu0 %v187
    %566 = vmatmul.f32.gmra.mxu0 %v548
    %v567 = vpop.f32.mrf.mxu0
    %v568 = vadd.f32 0.0, %v567
    %569 = vdwg.mxu0
    %v570 = vadd.f32 %v163, %v568
    %v571 = vxor.u32 %v570, 2147483648
    %v572 = vmul.f32 %v571, 1.442695
    %v573 = vpow.pop %v572
    %v574 = vadd.f32 %v573, 1.0
    %v575 = vrcp.pop %v574
    %v576 = vmul.f32 %v574, %v575
    %v577 = vsub.f32 1.0, %v576
    %v578 = vmul.f32 %v575, %v577
    %v579 = vadd.f32 %v575, %v578
    %vm580 = vweird.f32 %v574
    %vm581 = vweird.f32 %v575
    %vm582 = vmor %vm580, %vm581
    %v583 = vsel %vm582, %v575, %v579
    %v584 = vand.u32 2147483647, %v574
    %vm585 = vcmp.eq.f32.partialorder %v584, 8.507059e+37
    %v586 = vand.u32 %v574, 2147483648
    %v587 = vor.u32 1.1754944e-38, %v586
    %v588 = vsel %vm585, %v587, %v583
    %v589 = vmul.f32 1.0, %v588
    %v590 = vtanh.pop %v570
    %v592 = vrot.slane %v537, 6
    %v594 = vmul.f32 %v589, %v592
    %596 = vrot.lane.b32.xlu0 %v590, 64
    %v597 = vpop.permute.xlu0 %596
    %v599 = vmul.f32 %v589, %v597
    %601 = vrot.lane.b32.xlu0 %v599, 32
    %v602 = vpop.permute.xlu0 %601
    %v604 = vadd.f32 %v594, %v602
    %v605 = vtanh.pop %v604
    %607 = vrot.lane.b32.xlu0 %v605, 64
    %v608 = vpop.permute.xlu0 %607
    %v610 = vmul.f32 %v589, %v608
    %612 = vrot.lane.b32.xlu0 %v610, 32
    %v613 = vpop.permute.xlu0 %612
    %v614 = vsel %vm135, %v613, 0
    %616 = vmatpush.msra.mxu0 0.0
    %617 = vmatpush.msra.mxu0 0.0
    %618 = vmatpush.msra.mxu0 0.0
    %619 = vmatpush.msra.mxu0 0.0
    %620 = vmatpush.msra.mxu0 0.0
    %621 = vmatpush.msra.mxu0 0.0
    %622 = vmatpush.msra.mxu0 0.0
    %623 = vmatpush.msra.mxu0 0.0
    %624 = vmatpush.msra.mxu0 0.0
    %625 = vmatpush.msra.mxu0 0.0
    %626 = vmatpush.msra.mxu0 0.0
    %627 = vmatpush.msra.mxu0 0.0
    %628 = vmatpush.msra.mxu0 %v190
    %629 = vmatpush.msra.mxu0 %v189
    %630 = vmatpush.msra.mxu0 %v188
    %631 = vmatpush.msra.mxu0 %v187
    %632 = vmatmul.f32.gmra.mxu0 %v614
    %v633 = vpop.f32.mrf.mxu0
    %v634 = vadd.f32 0.0, %v633
    %635 = vdwg.mxu0
    %v637 = vrot.slane %v634, 6
    %v639 = vadd.f32 %v163, %v637
    %v640 = vxor.u32 %v639, 2147483648
    %v641 = vmul.f32 %v640, 1.442695
    %v642 = vpow.pop %v641
    %v643 = vadd.f32 %v642, 1.0
    %v644 = vrcp.pop %v643
    %v645 = vmul.f32 %v643, %v644
    %v646 = vsub.f32 1.0, %v645
    %v647 = vmul.f32 %v644, %v646
    %v648 = vadd.f32 %v644, %v647
    %vm649 = vweird.f32 %v643
    %vm650 = vweird.f32 %v644
    %vm651 = vmor %vm649, %vm650
    %v652 = vsel %vm651, %v644, %v648
    %v653 = vand.u32 2147483647, %v643
    %vm654 = vcmp.eq.f32.partialorder %v653, 8.507059e+37
    %v655 = vand.u32 %v643, 2147483648
    %v656 = vor.u32 1.1754944e-38, %v655
    %v657 = vsel %vm654, %v656, %v652
    %v658 = vmul.f32 1.0, %v657
    %v659 = vtanh.pop %v639
    %v661 = vrot.slane %v604, 6
    %v663 = vmul.f32 %v658, %v661
    %665 = vrot.lane.b32.xlu0 %v659, 64
    %v666 = vpop.permute.xlu0 %665
    %v668 = vmul.f32 %v658, %v666
    %670 = vrot.lane.b32.xlu0 %v668, 32
    %v671 = vpop.permute.xlu0 %670
    %v673 = vadd.f32 %v663, %v671
    %v674 = vtanh.pop %v673
    %676 = vrot.lane.b32.xlu0 %v674, 64
    %v677 = vpop.permute.xlu0 %676
    %v679 = vmul.f32 %v658, %v677
    %v681 = vrot.slane %v679, 2
    %682 = vrot.lane.b32.xlu0 %v681, 32
    %v683 = vpop.permute.xlu0 %682
    %v684 = vsel %vm135, %v683, 0
    %686 = vmatpush.msra.mxu0 0.0
    %687 = vmatpush.msra.mxu0 0.0
    %688 = vmatpush.msra.mxu0 0.0
    %689 = vmatpush.msra.mxu0 0.0
    %690 = vmatpush.msra.mxu0 0.0
    %691 = vmatpush.msra.mxu0 0.0
    %692 = vmatpush.msra.mxu0 0.0
    %693 = vmatpush.msra.mxu0 0.0
    %694 = vmatpush.msra.mxu0 0.0
    %695 = vmatpush.msra.mxu0 0.0
    %696 = vmatpush.msra.mxu0 0.0
    %697 = vmatpush.msra.mxu0 0.0
    %698 = vmatpush.msra.mxu0 %v190
    %699 = vmatpush.msra.mxu0 %v189
    %700 = vmatpush.msra.mxu0 %v188
    %701 = vmatpush.msra.mxu0 %v187
    %702 = vmatmul.f32.gmra.mxu0 %v684
    %v703 = vpop.f32.mrf.mxu0
    %v704 = vadd.f32 0.0, %v703
    %705 = vdwg.mxu0
    %v707 = vrot.slane %v704, 4
    %v709 = vadd.f32 %v163, %v707
    %v710 = vxor.u32 %v709, 2147483648
    %v711 = vmul.f32 %v710, 1.442695
    %v712 = vpow.pop %v711
    %v713 = vadd.f32 %v712, 1.0
    %v714 = vrcp.pop %v713
    %v715 = vmul.f32 %v713, %v714
    %v716 = vsub.f32 1.0, %v715
    %v717 = vmul.f32 %v714, %v716
    %v718 = vadd.f32 %v714, %v717
    %vm719 = vweird.f32 %v713
    %vm720 = vweird.f32 %v714
    %vm721 = vmor %vm719, %vm720
    %v722 = vsel %vm721, %v714, %v718
    %v723 = vand.u32 2147483647, %v713
    %vm724 = vcmp.eq.f32.partialorder %v723, 8.507059e+37
    %v725 = vand.u32 %v713, 2147483648
    %v726 = vor.u32 1.1754944e-38, %v725
    %v727 = vsel %vm724, %v726, %v722
    %v728 = vmul.f32 1.0, %v727
    %v729 = vtanh.pop %v709
    %v731 = vrot.slane %v673, 6
    %v733 = vmul.f32 %v728, %v731
    %735 = vrot.lane.b32.xlu0 %v729, 64
    %v736 = vpop.permute.xlu0 %735
    %v738 = vmul.f32 %v728, %v736
    %740 = vrot.lane.b32.xlu0 %v738, 32
    %v741 = vpop.permute.xlu0 %740
    %v743 = vadd.f32 %v733, %v741
    %v744 = vtanh.pop %v743
    %746 = vrot.lane.b32.xlu0 %v744, 64
    %v747 = vpop.permute.xlu0 %746
    %v749 = vmul.f32 %v728, %v747
    %v751 = vrot.slane %v749, 4
    %752 = vrot.lane.b32.xlu0 %v751, 32
    %v753 = vpop.permute.xlu0 %752
    %v754 = vsel %vm135, %v753, 0
    %756 = vmatpush.msra.mxu0 0.0
    %757 = vmatpush.msra.mxu0 0.0
    %758 = vmatpush.msra.mxu0 0.0
    %759 = vmatpush.msra.mxu0 0.0
    %760 = vmatpush.msra.mxu0 0.0
    %761 = vmatpush.msra.mxu0 0.0
    %762 = vmatpush.msra.mxu0 0.0
    %763 = vmatpush.msra.mxu0 0.0
    %764 = vmatpush.msra.mxu0 0.0
    %765 = vmatpush.msra.mxu0 0.0
    %766 = vmatpush.msra.mxu0 0.0
    %767 = vmatpush.msra.mxu0 0.0
    %768 = vmatpush.msra.mxu0 %v190
    %769 = vmatpush.msra.mxu0 %v189
    %770 = vmatpush.msra.mxu0 %v188
    %771 = vmatpush.msra.mxu0 %v187
    %772 = vmatmul.f32.gmra.mxu0 %v754
    %v773 = vpop.f32.mrf.mxu0
    %v774 = vadd.f32 0.0, %v773
    %775 = vdwg.mxu0
    %v777 = vrot.slane %v774, 2
    %v779 = vadd.f32 %v163, %v777
    %v780 = vxor.u32 %v779, 2147483648
    %v781 = vmul.f32 %v780, 1.442695
    %v782 = vpow.pop %v781
    %v783 = vadd.f32 %v782, 1.0
    %v784 = vrcp.pop %v783
    %v785 = vmul.f32 %v783, %v784
    %v786 = vsub.f32 1.0, %v785
    %v787 = vmul.f32 %v784, %v786
    %v788 = vadd.f32 %v784, %v787
    %vm789 = vweird.f32 %v783
    %vm790 = vweird.f32 %v784
    %vm791 = vmor %vm789, %vm790
    %v792 = vsel %vm791, %v784, %v788
    %v793 = vand.u32 2147483647, %v783
    %vm794 = vcmp.eq.f32.partialorder %v793, 8.507059e+37
    %v795 = vand.u32 %v783, 2147483648
    %v796 = vor.u32 1.1754944e-38, %v795
    %v797 = vsel %vm794, %v796, %v792
    %v798 = vmul.f32 1.0, %v797
    %v799 = vtanh.pop %v779
    %v801 = vrot.slane %v743, 6
    %v803 = vmul.f32 %v798, %v801
    %805 = vrot.lane.b32.xlu0 %v799, 64
    %v806 = vpop.permute.xlu0 %805
    %v808 = vmul.f32 %v798, %v806
    %810 = vrot.lane.b32.xlu0 %v808, 32
    %v811 = vpop.permute.xlu0 %810
    %v813 = vadd.f32 %v803, %v811
    %v814 = vtanh.pop %v813
    %816 = vrot.lane.b32.xlu0 %v814, 64
    %v817 = vpop.permute.xlu0 %816
    %v819 = vmul.f32 %v798, %v817
    %821 = vrot.lane.b32.xlu0 %v819, 32
    %v822 = vpop.permute.xlu0 %821
    %825 = vrot.lane.b32.xlu0 %v267, 64
    %v826 = vpop.permute.xlu0 %825
    %v828 = vsel %vm135, %v822, %v826
    %v829 = vmax.f32 %v828, 0.0
    %vm830 = vcmask 523270
    %831 = vst.msk [vmem:[#allocation13 - $0x6] sm:$0xc0] %vm830, %v829
    // Predicated region
    $region54: #{tpu_custom_call.1} parent=1 // pred_check
      _
    $region55: #{tpu_custom_call.1} parent=1 // pred_check_branch
      %833 = sbr.rel (0) target = $region57
    $region56: #{tpu_custom_call.1} parent=1 // pred_region
      %835 = vsyncadd [#allocation4], 0
      %s837 = sshll.u32 [#allocation13], 4
      %s838 = int_to_ptr.vmem [resolvable:$true] %s837
      %s839 = sshll.u32 %s7, 4
      %s840 = int_to_ptr.hbm [resolvable:$true] %s839
      %842 = dma.vmem_to_hbm [thread:$0]  %s838, 32, %s840, [#allocation4]
    $region57: #{tpu_custom_call.1} parent=1 // pred_fallthru
      _
    // Predicated region
    $region58: #{tpu_custom_call.1} parent=1 // pred_check
      _
    $region59: #{tpu_custom_call.1} parent=1 // pred_check_branch
      %844 = sbr.rel (0) target = $region61
    $region60: #{tpu_custom_call.1} parent=1 // pred_region
      %846 = dma.done [#allocation4], 32
    $region61: #{tpu_custom_call.1} parent=1 // pred_fallthru
      _
    %847 = vsyncpa [#allocation3], 1
    %848 = vsyncpa [#allocation6], 1
    %849 = vsyncpa [#allocation9], 1
    %850 = vsyncpa [#allocation12], 1
    %851 = vsyncpa [#allocation4], 1

</llo_original>
